<compile_context>
chip_gen: v7x
topology: tpu7x:2x2x1
jax: 0.10.0
libtpu: 0.0.40
codegen_flags: <defaults>
</compile_context>

<pallas_src>
import functools

import jax
import jax.numpy as jnp
from jax import lax
from jax.experimental import pallas as pl
from jax.experimental.pallas import tpu as pltpu


def _round_up(x, m):
    return (x + m - 1) // m * m


def _vmem_capacity_bytes():
    """Physical VMEM of the local TPU generation (fallback: v7x's 64 MiB)."""
    try:
        info = pltpu.get_tpu_info()
        for name in ("vmem_capacity_bytes", "vmem_size_bytes", "vmem_bytes"):
            v = getattr(info, name, None)
            if v:
                return int(v)
    except Exception:
        pass
    return 64 << 20


def _vmem_estimate(tm, k, d, out_itemsize):
    """Conservative VMEM estimate: double-buffered DMA blocks for every operand
    (patches / weight / bias-gamma-beta / output) + in-kernel f32 temporaries.
    Lane dims padded to 128, sublane dims to the packing granule (Mosaic VMEM
    tiling)."""
    kp = _round_up(k, 128)
    dp = _round_up(d, 128)
    tmp = _round_up(tm, 16)
    patches = 2 * tmp * kp * 2                 # bf16 patch tile, x2 buffers
    weight = 2 * _round_up(k, 16) * dp * 2     # bf16 resident weight, x2 buffers
    bgb = 2 * 8 * dp * 4                       # (3, D) f32 -> 8 sublanes, x2
    out = 2 * tmp * dp * out_itemsize          # output tile, x2 buffers
    temps = 3 * tmp * dp * 4                   # y / (y-mean) / yn in f32
    return patches + weight + bgb + out + temps


def _pick_tile_m(m, k, d, out_itemsize, budget_bytes, max_tile_m):
    """Token-tile size: prefer a TM that divides M exactly (no padded rows, no
    wrapper slice) and is a multiple of 16 (bf16 sublane packing), as large as
    the per-generation VMEM budget allows."""
    kp = _round_up(k, 128)
    dp = _round_up(d, 128)
    fixed = 2 * _round_up(k, 16) * dp * 2 + 2 * 8 * dp * 4
    per_row = 2 * kp * 2 + 2 * dp * out_itemsize + 3 * dp * 4
    tm_max = (budget_bytes - fixed) // per_row
    tm_max = max(16, min(int(max_tile_m), int(tm_max) // 16 * 16))

    if m <= tm_max:
        return m, m                            # single full block, grid of 1

    best = 0
    for t in range(16, tm_max + 1, 16):        # largest 16-multiple divisor
        if m % t == 0:
            best = t
    if best:
        return best, m                         # Mp == M: no padded rows

    # Fallback: pad M up to a TM multiple (zero rows, sliced off afterwards).
    return tm_max, _round_up(m, tm_max)


def _patch_embed_ln_kernel(p_ref, w_ref, bgb_ref, o_ref, *, eps):
    # p_ref: (TM, K) bf16 patches; w_ref: (K, D) bf16; bgb_ref: (3, D) f32
    # holding [bias; gamma; beta]; o_ref: (TM, D) output tile.
    bgb = bgb_ref[...]                                        # (3, D) f32
    y = jnp.dot(p_ref[...], w_ref[...],
                preferred_element_type=jnp.float32)           # (TM, D) f32
    y = y + bgb[0:1, :]                                       # conv bias

    d = y.shape[-1]
    inv_d = jnp.float32(1.0 / d)
    # Single-pass LayerNorm stats over the (unpadded) real D columns.
    mean = jnp.sum(y, axis=-1, keepdims=True) * inv_d
    msq = jnp.sum(y * y, axis=-1, keepdims=True) * inv_d
    var = jnp.maximum(msq - mean * mean, 0.0)
    yn = (y - mean) * lax.rsqrt(var + eps)
    o_ref[...] = (yn * bgb[1:2, :] + bgb[2:3, :]).astype(o_ref.dtype)


def overlap_patch_embed(x, weight, bias, gamma, beta, *, patch_size, stride,
                        out_dtype=None, max_tile_m=2048):
    """x: (N, C, H, W).  weight: (D, C, ph, pw).  Returns (out, h, w) with
    out shaped (N, L, D), L = H'*W' — same as the PyTorch module.  out_dtype
    defaults to x.dtype (pass jnp.bfloat16 to halve output write bytes)."""
    N, C, H, W = x.shape
    D = weight.shape[0]
    ps, s = patch_size, stride
    pad = ps // 2
    Hout = (H + 2 * pad - ps) // s + 1
    Wout = (W + 2 * pad - ps) // s + 1
    L = Hout * Wout
    M = N * L
    K = C * ps * ps
    out_dtype = x.dtype if out_dtype is None else jnp.dtype(out_dtype)

    # ---- glue: im2col (data movement only; see TODO at top of file) ----
    # bf16 cast up front so the materialized patch matrix is half-width.
    xp = jnp.pad(x, ((0, 0), (0, 0), (pad, pad), (pad, pad))).astype(jnp.bfloat16)
    cols = []
    for i in range(ps):
        for j in range(ps):
            cols.append(xp[:, :, i:i + s * Hout:s, j:j + s * Wout:s])  # (N,C,Hout,Wout)
    # (N, C, ps*ps, Hout, Wout): feature order (C, kh, kw) matches weight layout.
    patches = jnp.stack(cols, axis=2).reshape(N, K, Hout, Wout)
    patches = jnp.transpose(patches, (0, 2, 3, 1)).reshape(M, K)       # (M, K) bf16

    # ---- tiling / VMEM budget (per TPU generation) ----
    vmem_cap = _vmem_capacity_bytes()
    budget = max(8 << 20, vmem_cap // 2 - (16 << 20))   # ~48 MiB v5e/v6e, ~16 MiB v7x
    TM, Mp = _pick_tile_m(M, K, D, out_dtype.itemsize, budget, max_tile_m)
    if Mp > M:
        patches = jnp.pad(patches, ((0, Mp - M), (0, 0)))

    # Resident operands: unpadded (K, D) bf16 weight + merged (3, D) f32 affine.
    w_mat = weight.reshape(D, K).T.astype(jnp.bfloat16)                # (K, D)
    bgb = jnp.stack([bias.astype(jnp.float32),
                     gamma.astype(jnp.float32),
                     beta.astype(jnp.float32)], axis=0)                # (3, D)

    est = _vmem_estimate(TM, K, D, out_dtype.itemsize)
    vmem_limit = int(min(vmem_cap * 3 // 4, max(48 << 20, est + (16 << 20))))

    kernel = functools.partial(_patch_embed_ln_kernel, eps=1e-6)
    out = pl.pallas_call(
        kernel,
        out_shape=jax.ShapeDtypeStruct((Mp, D), out_dtype),
        grid_spec=pltpu.PrefetchScalarGridSpec(
            num_scalar_prefetch=0,
            grid=(Mp // TM,),
            in_specs=[
                pl.BlockSpec((TM, K), lambda i: (i, 0)),   # patch tile (pipelined)
                pl.BlockSpec((K, D), lambda i: (0, 0)),    # weight (resident)
                pl.BlockSpec((3, D), lambda i: (0, 0)),    # bias/gamma/beta
            ],
            out_specs=pl.BlockSpec((TM, D), lambda i: (i, 0)),
        ),
        compiler_params=pltpu.CompilerParams(
            dimension_semantics=("parallel",),             # v7x megacore sharding
            vmem_limit_bytes=vmem_limit,
        ),
    )(patches, w_mat, bgb)

    if Mp > M:
        out = out[:M]
    out = out.reshape(N, L, D)
    return out, Hout, Wout


def _reference(x, weight, bias, gamma, beta, *, patch_size, stride):
    pad = patch_size // 2
    y = lax.conv_general_dilated(
        x, weight, window_strides=(stride, stride),
        padding=[(pad, pad), (pad, pad)],
        dimension_numbers=("NCHW", "OIHW", "NCHW"))
    y = y + bias.reshape(1, -1, 1, 1)
    N, D, Hout, Wout = y.shape
    y = jnp.transpose(y, (0, 2, 3, 1)).reshape(N, Hout * Wout, D)  # NLC
    mean = jnp.mean(y, axis=-1, keepdims=True)
    var = jnp.mean((y - mean) ** 2, axis=-1, keepdims=True)
    yn = (y - mean) * lax.rsqrt(var + 1e-6)
    return yn * gamma + beta, Hout, Wout


if __name__ == "__main__":
    # Small MiT-like first-stage config.
    N, C, H, W = 2, 4, 32, 32
    embed_dim = 32
    patch_size = 7
    stride = 4

    key = jax.random.PRNGKey(0)
    kx, kw, kb, kg, kbt = jax.random.split(key, 5)
    x = jax.random.normal(kx, (N, C, H, W), dtype=jnp.float32)
    weight = jax.random.normal(kw, (embed_dim, C, patch_size, patch_size),
                               dtype=jnp.float32) * 0.05
    bias = jax.random.normal(kb, (embed_dim,), dtype=jnp.float32) * 0.05
    gamma = 1.0 + 0.1 * jax.random.normal(kg, (embed_dim,), dtype=jnp.float32)
    beta = 0.1 * jax.random.normal(kbt, (embed_dim,), dtype=jnp.float32)

    ref, h_ref, w_ref = _reference(x, weight, bias, gamma, beta,
                                   patch_size=patch_size, stride=stride)

    # f32 output; max_tile_m=64 forces a 2-step grid (M=128) to exercise tiling.
    out, h, w = overlap_patch_embed(x, weight, bias, gamma, beta,
                                    patch_size=patch_size, stride=stride,
                                    max_tile_m=64)
    out = jax.block_until_ready(out)
    assert (h, w) == (h_ref, w_ref)
    assert out.shape == ref.shape
    assert out.dtype == x.dtype
    # Loose tolerance: kernel uses bf16 MXU operands (f32 accumulate / f32 LN),
    # reference is full f32.
    assert jnp.allclose(out, ref, atol=5e-2, rtol=5e-2)
    assert bool(jnp.isfinite(out).all())

    # bf16-output path (halves output write bytes), single-block grid.
    out_bf16, _, _ = overlap_patch_embed(x, weight, bias, gamma, beta,
                                         patch_size=patch_size, stride=stride,
                                         out_dtype=jnp.bfloat16)
    out_bf16 = jax.block_until_ready(out_bf16)
    assert out_bf16.dtype == jnp.bfloat16
    assert out_bf16.shape == ref.shape
    assert jnp.allclose(out_bf16.astype(jnp.float32), ref, atol=6e-2, rtol=6e-2)
    assert bool(jnp.isfinite(out_bf16.astype(jnp.float32)).all())

    print("KERNEL_OK")
</pallas_src>

<mosaic_0001>
module attributes {stable_mosaic.version = 11 : i64} {
  func.func @_patch_embed_ln_kernel(%arg0: i32, %arg1: memref<64x196xbf16, #tpu.memory_space<vmem>>, %arg2: memref<196x32xbf16, #tpu.memory_space<vmem>>, %arg3: memref<3x32xf32, #tpu.memory_space<vmem>>, %arg4: memref<64x32xf32, #tpu.memory_space<vmem>>) attributes {dimension_semantics = [#tpu.dimension_semantics<parallel>], iteration_bounds = array<i64: 2>, scalar_prefetch = 0 : i64, scratch_operands = 0 : i64, tpu.core_type = #tpu.core_type<tc>, window_params = [{transform_indices = @transform_0, window_bounds = array<i64: 64, 196>}, {pipeline_mode = #tpu.pipeline_mode<synchronous>, transform_indices = @transform_1, window_bounds = array<i64: 196, 32>}, {pipeline_mode = #tpu.pipeline_mode<synchronous>, transform_indices = @transform_2, window_bounds = array<i64: 3, 32>}, {transform_indices = @transform_3, window_bounds = array<i64: 64, 32>}]} {
    %c0 = arith.constant 0 : index
    %c0_0 = arith.constant 0 : index
    %0 = vector.load %arg3[%c0, %c0_0] : memref<3x32xf32, #tpu.memory_space<vmem>>, vector<3x32xf32>
    %c0_1 = arith.constant 0 : index
    %c0_2 = arith.constant 0 : index
    %1 = vector.load %arg1[%c0_1, %c0_2] : memref<64x196xbf16, #tpu.memory_space<vmem>>, vector<64x196xbf16>
    %c0_3 = arith.constant 0 : index
    %c0_4 = arith.constant 0 : index
    %2 = vector.load %arg2[%c0_3, %c0_4] : memref<196x32xbf16, #tpu.memory_space<vmem>>, vector<196x32xbf16>
    %cst = arith.constant dense<0.000000e+00> : vector<64x32xf32>
    %3 = tpu.matmul %1, %2, %cst {dimension_numbers = #tpu.dot_dimension_numbers<[1], [0], [0], [1], [0, 0, 1, 1], [], []>} : vector<64x196xbf16>, vector<196x32xbf16>, vector<64x32xf32> -> vector<64x32xf32>
    %4 = vector.extract_strided_slice %0 {offsets = [0, 0], sizes = [1, 32], strides = [1, 1]} : vector<3x32xf32> to vector<1x32xf32>
    %5 = vector.broadcast %4 : vector<1x32xf32> to vector<64x32xf32>
    %6 = arith.addf %3, %5 : vector<64x32xf32>
    %cst_5 = arith.constant dense<0.000000e+00> : vector<64xf32>
    %7 = vector.multi_reduction <add>, %6, %cst_5 [1] : vector<64x32xf32> to vector<64xf32>
    %8 = vector.shape_cast %7 : vector<64xf32> to vector<64x1xf32>
    %cst_6 = arith.constant 3.125000e-02 : f32
    %9 = vector.broadcast %cst_6 : f32 to vector<64x1xf32>
    %10 = arith.mulf %8, %9 : vector<64x1xf32>
    %11 = arith.mulf %6, %6 : vector<64x32xf32>
    %cst_7 = arith.constant dense<0.000000e+00> : vector<64xf32>
    %12 = vector.multi_reduction <add>, %11, %cst_7 [1] : vector<64x32xf32> to vector<64xf32>
    %13 = vector.shape_cast %12 : vector<64xf32> to vector<64x1xf32>
    %cst_8 = arith.constant 3.125000e-02 : f32
    %14 = vector.broadcast %cst_8 : f32 to vector<64x1xf32>
    %15 = arith.mulf %13, %14 : vector<64x1xf32>
    %16 = arith.mulf %10, %10 : vector<64x1xf32>
    %17 = arith.subf %15, %16 : vector<64x1xf32>
    %cst_9 = arith.constant 0.000000e+00 : f32
    %18 = vector.broadcast %cst_9 : f32 to vector<64x1xf32>
    %19 = arith.maximumf %17, %18 : vector<64x1xf32>
    %20 = vector.broadcast %10 : vector<64x1xf32> to vector<64x32xf32>
    %21 = arith.subf %6, %20 : vector<64x32xf32>
    %cst_10 = arith.constant 9.99999997E-7 : f32
    %22 = vector.broadcast %cst_10 : f32 to vector<64x1xf32>
    %23 = arith.addf %19, %22 : vector<64x1xf32>
    %24 = math.rsqrt %23 : vector<64x1xf32>
    %25 = vector.broadcast %24 : vector<64x1xf32> to vector<64x32xf32>
    %26 = arith.mulf %21, %25 : vector<64x32xf32>
    %27 = vector.extract_strided_slice %0 {offsets = [1, 0], sizes = [1, 32], strides = [1, 1]} : vector<3x32xf32> to vector<1x32xf32>
    %28 = vector.broadcast %27 : vector<1x32xf32> to vector<64x32xf32>
    %29 = arith.mulf %26, %28 : vector<64x32xf32>
    %30 = vector.extract_strided_slice %0 {offsets = [2, 0], sizes = [1, 32], strides = [1, 1]} : vector<3x32xf32> to vector<1x32xf32>
    %31 = vector.broadcast %30 : vector<1x32xf32> to vector<64x32xf32>
    %32 = arith.addf %29, %31 : vector<64x32xf32>
    %c0_11 = arith.constant 0 : index
    %c0_12 = arith.constant 0 : index
    %33 = vector.load %arg4[%c0_11, %c0_12] : memref<64x32xf32, #tpu.memory_space<vmem>>, vector<64x32xf32>
    tpu.vector_store %arg4[%c0_11, %c0_12], %32 {strides = array<i32>} : memref<64x32xf32, #tpu.memory_space<vmem>>, vector<64x32xf32>,
    return
  }
  func.func @transform_0(%arg0: i32) -> (i32, i32) {
    %c0_i32 = arith.constant 0 : i32
    %c0_i32_0 = arith.constant 0 : i32
    return %arg0, %c0_i32 : i32, i32
  }
  func.func @transform_1(%arg0: i32) -> (i32, i32) {
    %c0_i32 = arith.constant 0 : i32
    %c0_i32_0 = arith.constant 0 : i32
    %c0_i32_1 = arith.constant 0 : i32
    return %c0_i32, %c0_i32_0 : i32, i32
  }
  func.func @transform_2(%arg0: i32) -> (i32, i32) {
    %c0_i32 = arith.constant 0 : i32
    %c0_i32_0 = arith.constant 0 : i32
    %c0_i32_1 = arith.constant 0 : i32
    return %c0_i32, %c0_i32_0 : i32, i32
  }
  func.func @transform_3(%arg0: i32) -> (i32, i32) {
    %c0_i32 = arith.constant 0 : i32
    %c0_i32_0 = arith.constant 0 : i32
    return %arg0, %c0_i32 : i32, i32
  }
}

</mosaic_0001>

<llo_original>
// kernel: tpu_custom_call.1
$region0: #{tpu_custom_call.1}
  #allocation0 [shape = 'u32[]', space=smem, size = 0x4, offset = 0x4, fixed_abs, tag = 'smem constant byte address 0x4 - core index']
  #allocation1 [shape = 'u32[144,128]{1,0:T(1,128)}', space=vmem, size = 0x12000, scoped, tag = 'internal scratch']
  %s0 = inlined_call_operand.vmem [shape: bf16[128,196], index: 0, kind: input, shape index: {}]
  %s1 = inlined_call_operand.vmem [shape: bf16[196,32], index: 1, kind: input, shape index: {}]
  %s2 = inlined_call_operand.vmem [shape: f32[3,32], index: 2, kind: input, shape index: {}]
  %s3 = inlined_call_operand.vmem [shape: f32[128,32], index: 3, kind: output, shape index: {}]
  %s4 = sld [smem:[#allocation0]]
  $region45: #{tpu_custom_call.1} parent=0
    _
  %s6 = ssub.s32 1, %s4
  %s7 = scalar_select 0, %s6, %s4
  loop: start=0, step=1, limit=4
  $region2: #{tpu_custom_call.1} parent=0 // loop_pre_header
    _
  $region3: #{tpu_custom_call.1} parent=0 // loop_header
    %s9 = sphi 0, %s13
    %p10 = scmp.ge.s32.totalorder %s9, 4
    %s19 = sphi 0, %s21
    %s22 = sphi 0, %s19
    %s23 = sphi 0, %s22
    %s39 = sphi 0, %s23
    %s43 = sphi 0, %s43
    %s45 = sphi 0, %s43
    %s46 = sphi 0, %s45
    %s60 = sphi 0, %s46
    %s64 = sphi 0, %s64
    %s66 = sphi 0, %s64
    %s67 = sphi 0, %s66
    %s81 = sphi 0, %s67
    %s87 = sphi 0, %s89
    %s90 = sphi 0, %s87
    %s91 = sphi 0, %s90
    %s107 = sphi 0, %s91
  $region4: #{tpu_custom_call.1} parent=0 // loop_header_branch
    %12 = sbr.rel (%p10) target = $region8
  $region5: #{tpu_custom_call.1} parent=0 // loop_body
    %s14 = ssub.s32 %s9, 1
    %s15 = ssub.s32 %s9, 2
    %s16 = sadd.s32 %s9, 1
    %s17 = ssub.s32 %s9, %s16
    %p18 = scmp.eq.s32.totalorder %s17, 0
    %s20 = sadd.s32 %s19, 1
    %s21 = scalar_select %p18, %s19, %s20
    %p24 = pneg %p18
    %p25 = scmp.eq.s32.totalorder %s9, 1
    %p26 = por %p24, %p25
    %p27 = scmp.ne.s32.totalorder %s19, %s22
    %p28 = scmp.eq.s32.totalorder %s9, 0
    %p29 = por %p27, %p28
    %p30 = scmp.ne.s32.totalorder %s19, %s22
    %p31 = scmp.eq.s32.totalorder %s14, 1
    %p32 = por %p30, %p31
    %p33 = scmp.ne.s32.totalorder %s22, %s23
    %p34 = scmp.eq.s32.totalorder %s14, 0
    %p35 = por %p33, %p34
    %p36 = scmp.ne.s32.totalorder %s22, %s23
    %p37 = scmp.eq.s32.totalorder %s15, 1
    %p38 = por %p36, %p37
    %p40 = scmp.ne.s32.totalorder %s23, %s39
    %p41 = scmp.eq.s32.totalorder %s15, 0
    %p42 = por %p40, %p41
    %s44 = sadd.s32 %s43, 1
    %p47 = scmp.eq.s32.totalorder %s9, 1
    %p48 = scmp.ne.s32.totalorder %s43, %s45
    %p49 = scmp.eq.s32.totalorder %s9, 0
    %p50 = por %p48, %p49
    %p51 = scmp.ne.s32.totalorder %s43, %s45
    %p52 = scmp.eq.s32.totalorder %s14, 1
    %p53 = por %p51, %p52
    %p54 = scmp.ne.s32.totalorder %s45, %s46
    %p55 = scmp.eq.s32.totalorder %s14, 0
    %p56 = por %p54, %p55
    %p57 = scmp.ne.s32.totalorder %s45, %s46
    %p58 = scmp.eq.s32.totalorder %s15, 1
    %p59 = por %p57, %p58
    %p61 = scmp.ne.s32.totalorder %s46, %s60
    %p62 = scmp.eq.s32.totalorder %s15, 0
    %p63 = por %p61, %p62
    %s65 = sadd.s32 %s64, 1
    %p68 = scmp.eq.s32.totalorder %s9, 1
    %p69 = scmp.ne.s32.totalorder %s64, %s66
    %p70 = scmp.eq.s32.totalorder %s9, 0
    %p71 = por %p69, %p70
    %p72 = scmp.ne.s32.totalorder %s64, %s66
    %p73 = scmp.eq.s32.totalorder %s14, 1
    %p74 = por %p72, %p73
    %p75 = scmp.ne.s32.totalorder %s66, %s67
    %p76 = scmp.eq.s32.totalorder %s14, 0
    %p77 = por %p75, %p76
    %p78 = scmp.ne.s32.totalorder %s66, %s67
    %p79 = scmp.eq.s32.totalorder %s15, 1
    %p80 = por %p78, %p79
    %p82 = scmp.ne.s32.totalorder %s67, %s81
    %p83 = scmp.eq.s32.totalorder %s15, 0
    %p84 = por %p82, %p83
    %s85 = ssub.s32 %s9, %s16
    %p86 = scmp.eq.s32.totalorder %s85, 0
    %s88 = sadd.s32 %s87, 1
    %s89 = scalar_select %p86, %s87, %s88
    %p92 = pneg %p86
    %p93 = scmp.eq.s32.totalorder %s9, 1
    %p94 = por %p92, %p93
    %p95 = scmp.ne.s32.totalorder %s87, %s90
    %p96 = scmp.eq.s32.totalorder %s9, 0
    %p97 = por %p95, %p96
    %p98 = scmp.ne.s32.totalorder %s87, %s90
    %p99 = scmp.eq.s32.totalorder %s14, 1
    %p100 = por %p98, %p99
    %p101 = scmp.ne.s32.totalorder %s90, %s91
    %p102 = scmp.eq.s32.totalorder %s14, 0
    %p103 = por %p101, %p102
    %p104 = scmp.ne.s32.totalorder %s90, %s91
    %p105 = scmp.eq.s32.totalorder %s15, 1
    %p106 = por %p104, %p105
    %p108 = scmp.ne.s32.totalorder %s91, %s107
    %p109 = scmp.eq.s32.totalorder %s15, 0
    %p110 = por %p108, %p109
    %p111 = scmp.le.s32.totalorder 1, %s9
    %p112 = scmp.lt.s32.totalorder %s9, 3
    %p113 = pnand %p111, %p112
    %p114 = pneg %p113
    // Predicated region
    $region9: #{tpu_custom_call.1} parent=5 // pred_check
      _
    $region10: #{tpu_custom_call.1} parent=5 // pred_check_branch
      %116 = sbr.rel (%p113) target = $region12
    $region11: #{tpu_custom_call.1} parent=5 // pred_region
      %s117 = ssub.s32 %s9, 1
      // Predicated region
      $region13: #{tpu_custom_call.1} parent=11 // pred_check
        %p118 = pneg %p56
      $region14: #{tpu_custom_call.1} parent=11 // pred_check_branch
        %120 = sbr.rel (%p118) target = $region16
      $region15: #{tpu_custom_call.1} parent=11 // pred_region
        _
      $region16: #{tpu_custom_call.1} parent=11 // pred_fallthru
        _
      // Predicated region
      $region17: #{tpu_custom_call.1} parent=11 // pred_check
        %p121 = pneg %p77
      $region18: #{tpu_custom_call.1} parent=11 // pred_check_branch
        %123 = sbr.rel (%p121) target = $region20
      $region19: #{tpu_custom_call.1} parent=11 // pred_region
        _
      $region20: #{tpu_custom_call.1} parent=11 // pred_fallthru
        _
    $region12: #{tpu_custom_call.1} parent=5 // pred_fallthru
      _
    %p124 = scmp.lt.s32.totalorder %s9, 2
    // Predicated region
    $region21: #{tpu_custom_call.1} parent=5 // pred_check
      %p125 = pneg %p124
    $region22: #{tpu_custom_call.1} parent=5 // pred_check_branch
      %127 = sbr.rel (%p125) target = $region24
    $region23: #{tpu_custom_call.1} parent=5 // pred_region
      // Predicated region
      $region25: #{tpu_custom_call.1} parent=23 // pred_check
        %p128 = pneg %p29
      $region26: #{tpu_custom_call.1} parent=23 // pred_check_branch
        %130 = sbr.rel (%p128) target = $region28
      $region27: #{tpu_custom_call.1} parent=23 // pred_region
        %s131 = smul.u32 8, %s9
        %p132 = scmp.lt.s32.totalorder %s131, 15
        %s133 = scalar_select %p132, %s131, 15
        %s134 = smul.addr %s133, 2
        %s135 = smul.addr %s134, 4
        %s136 = scalar_lea.vmem %s0, %s135
        %s137 = smul.u32 8, %s9
      $region28: #{tpu_custom_call.1} parent=23 // pred_fallthru
        _
    $region24: #{tpu_custom_call.1} parent=5 // pred_fallthru
      _
    %p138 = scmp.le.s32.totalorder 1, %s9
    %p139 = scmp.lt.s32.totalorder %s9, 3
    %p140 = pnand %p138, %p139
    %p141 = pneg %p140
    // Predicated region
    $region29: #{tpu_custom_call.1} parent=5 // pred_check
      _
    $region30: #{tpu_custom_call.1} parent=5 // pred_check_branch
      %143 = sbr.rel (%p140) target = $region32
    $region31: #{tpu_custom_call.1} parent=5 // pred_region
      %s144 = ssub.s32 %s9, 1
      %s145 = smul.u32 8, %s14
      %p146 = scmp.lt.s32.totalorder %s145, 15
      %s147 = scalar_select %p146, %s145, 15
      %s148 = smul.addr %s147, 2
      %s149 = smul.addr %s148, 4
      %s150 = scalar_lea.vmem %s0, %s149
      %p151 = pneg %p35
      %p152 = pneg %p32
      %p153 = pneg %p56
      %p154 = pneg %p53
      %p155 = pneg %p77
      %p156 = pneg %p74
      %p157 = pneg %p103
      %p158 = pneg %p100
      %s159 = smul.u32 8, %s14
      %p160 = scmp.lt.s32.totalorder %s159, 15
      %s161 = scalar_select %p160, %s159, 15
      %s162 = smul.addr %s161, 8
      %s163 = scalar_lea.vmem %s3, %s162
      %s164 = smul.u32 8, %s14
      %p165 = scmp.lt.s32.totalorder %s164, 15
      %s166 = scalar_select %p165, %s164, 15
      %s167 = smul.addr %s166, 2
      %s168 = smul.addr %s167, 4
      %s169 = scalar_lea.vmem %s0, %s168
      %s170 = smul.u32 8, %s14
      %s171 = smul.u32 8, %s14
      %p172 = scmp.lt.s32.totalorder %s171, 15
      %s173 = scalar_select %p172, %s171, 15
      %s174 = smul.addr %s173, 8
      %s175 = scalar_lea.vmem %s3, %s174
      %s176 = smul.u32 8, %s14
      %v178 = vld [vmem:[%s2] sm:$0x7]
      %v179 = vld [vmem:[%s169] sm:$0xff]
      %v180 = vld [vmem:[%s169 + $0x8] sm:$0xff]
      %v181 = vld [vmem:[%s169 + $0x10] sm:$0xff]
      %v182 = vld [vmem:[%s169 + $0x18] sm:$0xff]
      %v183 = vld [vmem:[%s169 + $0x20] sm:$0xff]
      %v184 = vld [vmem:[%s169 + $0x28] sm:$0xff]
      %v185 = vld [vmem:[%s169 + $0x30] sm:$0xff]
      %v186 = vld [vmem:[%s169 + $0x38] sm:$0xff]
      %v187 = vld [vmem:[%s1] sm:$0xf]
      %v188 = vld [vmem:[%s1 + $0x4] sm:$0xf]
      %v189 = vld [vmem:[%s1 + $0x8] sm:$0xf]
      %v190 = vld [vmem:[%s1 + $0xc] sm:$0xf]
      %v191 = vld [vmem:[%s1 + $0x10] sm:$0xf]
      %v192 = vld [vmem:[%s1 + $0x14] sm:$0xf]
      %v193 = vld [vmem:[%s1 + $0x18] sm:$0xf]
      %v194 = vld [vmem:[%s1 + $0x1c] sm:$0xf]
      %v195 = vld [vmem:[%s1 + $0x20] sm:$0xf]
      %v196 = vld [vmem:[%s1 + $0x24] sm:$0xf]
      %v197 = vld [vmem:[%s1 + $0x28] sm:$0xf]
      %v198 = vld [vmem:[%s1 + $0x2c] sm:$0xf]
      %v199 = vld [vmem:[%s1 + $0x30] sm:$0xf]
      %v200 = vld [vmem:[%s1 + $0x34] sm:$0xf]
      %v201 = vld [vmem:[%s1 + $0x38] sm:$0xf]
      %v202 = vld [vmem:[%s1 + $0x3c] sm:$0xf]
      %v203 = vld [vmem:[%s1 + $0x40] sm:$0xf]
      %v204 = vld [vmem:[%s1 + $0x44] sm:$0xf]
      %v205 = vld [vmem:[%s1 + $0x48] sm:$0xf]
      %v206 = vld [vmem:[%s1 + $0x4c] sm:$0xf]
      %v207 = vld [vmem:[%s1 + $0x50] sm:$0xf]
      %v208 = vld [vmem:[%s1 + $0x54] sm:$0xf]
      %v209 = vld [vmem:[%s1 + $0x58] sm:$0xf]
      %v210 = vld [vmem:[%s1 + $0x5c] sm:$0xf]
      %v211 = vld [vmem:[%s1 + $0x60] sm:$0x3]
      %v212 = vlaneseq
      %v213 = vshrl.u32 %v212, 7
      %v214 = vsub.s32 0, %v213
      %v215 = vrot.slane %v178, %v214
      %v224 = vunpack.c.l.b16 %v179
      %v225 = vunpack.c.h.b16 %v179
      %v226 = vunpack.c.l.b16 %v180
      %v227 = vunpack.c.h.b16 %v180
      %v228 = vunpack.c.l.b16 %v181
      %v229 = vunpack.c.h.b16 %v181
      %v230 = vunpack.c.l.b16 %v182
      %v231 = vunpack.c.h.b16 %v182
      %v232 = vunpack.c.l.b16 %v183
      %v233 = vunpack.c.h.b16 %v183
      %v234 = vunpack.c.l.b16 %v184
      %v235 = vunpack.c.h.b16 %v184
      %v236 = vunpack.c.l.b16 %v185
      %v237 = vunpack.c.h.b16 %v185
      %v238 = vunpack.c.l.b16 %v186
      %v239 = vunpack.c.h.b16 %v186
      %v240 = vpack.c.b16 %v226, %v224
      %v241 = vpack.c.b16 %v227, %v225
      %v242 = vpack.c.b16 %v230, %v228
      %v243 = vpack.c.b16 %v231, %v229
      %v244 = vpack.c.b16 %v234, %v232
      %v245 = vpack.c.b16 %v235, %v233
      %v246 = vpack.c.b16 %v238, %v236
      %v247 = vpack.c.b16 %v239, %v237
      %v277 = vunpack.c.l.b16 %v187
      %v278 = vunpack.c.l.b16 %v188
      %v279 = vunpack.c.l.b16 %v189
      %v280 = vunpack.c.l.b16 %v190
      %v281 = vunpack.c.l.b16 %v191
      %v282 = vunpack.c.l.b16 %v192
      %v283 = vunpack.c.l.b16 %v193
      %v284 = vunpack.c.l.b16 %v194
      %v285 = vunpack.c.l.b16 %v195
      %v286 = vunpack.c.l.b16 %v196
      %v287 = vunpack.c.l.b16 %v197
      %v288 = vunpack.c.l.b16 %v198
      %v289 = vunpack.c.l.b16 %v199
      %v290 = vunpack.c.l.b16 %v200
      %v291 = vunpack.c.l.b16 %v201
      %v292 = vunpack.c.l.b16 %v202
      %v293 = vunpack.c.l.b16 %v203
      %v294 = vunpack.c.l.b16 %v204
      %v295 = vunpack.c.l.b16 %v205
      %v296 = vunpack.c.l.b16 %v206
      %v297 = vunpack.c.l.b16 %v207
      %v298 = vunpack.c.l.b16 %v208
      %v299 = vunpack.c.l.b16 %v209
      %v300 = vunpack.c.l.b16 %v210
      %v301 = vunpack.c.l.b16 %v211
      %v302 = vpack.c.b16 %v278, %v277
      %v303 = vpack.c.b16 %v280, %v279
      %v304 = vpack.c.b16 %v282, %v281
      %v305 = vpack.c.b16 %v284, %v283
      %v306 = vpack.c.b16 %v286, %v285
      %v307 = vpack.c.b16 %v288, %v287
      %v308 = vpack.c.b16 %v290, %v289
      %v309 = vpack.c.b16 %v292, %v291
      %v310 = vpack.c.b16 %v294, %v293
      %v311 = vpack.c.b16 %v296, %v295
      %v312 = vpack.c.b16 %v298, %v297
      %v313 = vpack.c.b16 %v300, %v299
      %v314 = vpack.c.b16 %v301, %v301
      %vm327 = vcmask 556032
      %v329 = vsel %vm327, %v241, 0
      %v332 = vsel %vm327, %v243, 0
      %v335 = vsel %vm327, %v245, 0
      %v338 = vsel %vm327, %v247, 0
      %vm340 = vcmask 1041408
      %v342 = vsel %vm340, %v314, 0
      %344 = vmatprep.subr.bf16.mxu0 0
      %345 = vmatpush1.bf16.msra.mxu0 %v302
      %346 = vmatprep.subr.bf16.mxu0 0
      %347 = vmatpush1.bf16.msra.mxu0 %v303
      %348 = vmatprep.subr.bf16.mxu0 0
      %349 = vmatpush1.bf16.msra.mxu0 %v304
      %350 = vmatprep.subr.bf16.mxu0 0
      %351 = vmatpush1.bf16.msra.mxu0 %v305
      %352 = vmatprep.subr.bf16.mxu0 0
      %353 = vmatpush1.bf16.msra.mxu0 %v306
      %354 = vmatprep.subr.bf16.mxu0 0
      %355 = vmatpush1.bf16.msra.mxu0 %v307
      %356 = vmatprep.subr.bf16.mxu0 0
      %357 = vmatpush1.bf16.msra.mxu0 %v308
      %358 = vmatprep.subr.bf16.mxu0 0
      %359 = vmatpush1.bf16.msra.mxu0 %v309
      %360 = vmatprep.subr.bf16.mxu0 0
      %361 = vmatpush1.bf16.msra.mxu0 %v310
      %362 = vmatprep.subr.bf16.mxu0 0
      %363 = vmatpush1.bf16.msra.mxu0 %v311
      %364 = vmatprep.subr.bf16.mxu0 0
      %365 = vmatpush1.bf16.msra.mxu0 %v312
      %366 = vmatprep.subr.bf16.mxu0 0
      %367 = vmatpush1.bf16.msra.mxu0 %v313
      %368 = vmatprep.subr.bf16.mxu0 0
      %369 = vmatpush1.bf16.msra.mxu0 %v342
      %370 = vmatprep.subr.bf16.mxu0 0
      %371 = vmatpush1.bf16.msra.mxu0 0
      %372 = vmatprep.subr.bf16.mxu0 0
      %373 = vmatpush1.bf16.msra.mxu0 0
      %374 = vmatprep.subr.bf16.mxu0 0
      %375 = vmatpush1.bf16.msra.mxu0 0
      %376 = vmatprep.mubr.bf16.mxu0 %v329
      %377 = vmatmul.mubr.bf16.gmra.mrb[0].mxu0 %v240
      %v378 = vpop.f32.mrb[0].mxu0
      %v379 = vadd.f32 %v215, %v378
      %v380 = vpop.f32.mrb[0].mxu0
      %v381 = vpop.f32.mrb[0].mxu0
      %v382 = vadd.f32 %v215, %v381
      %v383 = vpop.f32.mrb[0].mxu0
      %384 = vmatprep.mubr.bf16.mxu0 %v332
      %385 = vmatmul.mubr.bf16.gmra.mrb[0].mxu0 %v242
      %v386 = vpop.f32.mrb[0].mxu0
      %v387 = vadd.f32 %v215, %v386
      %v388 = vpop.f32.mrb[0].mxu0
      %v389 = vpop.f32.mrb[0].mxu0
      %v390 = vadd.f32 %v215, %v389
      %v391 = vpop.f32.mrb[0].mxu0
      %392 = vmatprep.mubr.bf16.mxu0 %v335
      %393 = vmatmul.mubr.bf16.gmra.mrb[0].mxu0 %v244
      %v394 = vpop.f32.mrb[0].mxu0
      %v395 = vadd.f32 %v215, %v394
      %v396 = vpop.f32.mrb[0].mxu0
      %v397 = vpop.f32.mrb[0].mxu0
      %v398 = vadd.f32 %v215, %v397
      %v399 = vpop.f32.mrb[0].mxu0
      %400 = vmatprep.mubr.bf16.mxu0 %v338
      %401 = vmatmul.mubr.bf16.gmra.mrb[0].mxu0 %v246
      %v402 = vpop.f32.mrb[0].mxu0
      %v403 = vadd.f32 %v215, %v402
      %v404 = vpop.f32.mrb[0].mxu0
      %v405 = vpop.f32.mrb[0].mxu0
      %v406 = vadd.f32 %v215, %v405
      %v407 = vpop.f32.mrb[0].mxu0
      %408 = vdwg.mxu0
      %vm409 = vcmask 261120
      %v410 = vsel %vm409, %v379, 0.0
      %411 = vadd.xlane.f32.xlu0 %v410
      %v412 = vpop.xlane.xlu0 %411
      %v413 = vsel %vm409, %v382, 0.0
      %414 = vadd.xlane.f32.xlu0 %v413
      %v415 = vpop.xlane.xlu0 %414
      %v416 = vsel %vm409, %v387, 0.0
      %417 = vadd.xlane.f32.xlu0 %v416
      %v418 = vpop.xlane.xlu0 %417
      %v419 = vsel %vm409, %v390, 0.0
      %420 = vadd.xlane.f32.xlu0 %v419
      %v421 = vpop.xlane.xlu0 %420
      %v422 = vsel %vm409, %v395, 0.0
      %423 = vadd.xlane.f32.xlu0 %v422
      %v424 = vpop.xlane.xlu0 %423
      %v425 = vsel %vm409, %v398, 0.0
      %426 = vadd.xlane.f32.xlu0 %v425
      %v427 = vpop.xlane.xlu0 %426
      %v428 = vsel %vm409, %v403, 0.0
      %429 = vadd.xlane.f32.xlu0 %v428
      %v430 = vpop.xlane.xlu0 %429
      %v431 = vsel %vm409, %v406, 0.0
      %432 = vadd.xlane.f32.xlu0 %v431
      %v433 = vpop.xlane.xlu0 %432
      %v434 = vmul.f32 %v412, 0.03125
      %v435 = vmul.f32 %v415, 0.03125
      %v436 = vmul.f32 %v418, 0.03125
      %v437 = vmul.f32 %v421, 0.03125
      %v438 = vmul.f32 %v424, 0.03125
      %v439 = vmul.f32 %v427, 0.03125
      %v440 = vmul.f32 %v430, 0.03125
      %v441 = vmul.f32 %v433, 0.03125
      %v442 = vmul.f32 %v379, %v379
      %v443 = vmul.f32 %v382, %v382
      %v444 = vmul.f32 %v387, %v387
      %v445 = vmul.f32 %v390, %v390
      %v446 = vmul.f32 %v395, %v395
      %v447 = vmul.f32 %v398, %v398
      %v448 = vmul.f32 %v403, %v403
      %v449 = vmul.f32 %v406, %v406
      %v450 = vsel %vm409, %v442, 0.0
      %451 = vadd.xlane.f32.xlu0 %v450
      %v452 = vpop.xlane.xlu0 %451
      %v453 = vsel %vm409, %v443, 0.0
      %454 = vadd.xlane.f32.xlu0 %v453
      %v455 = vpop.xlane.xlu0 %454
      %v456 = vsel %vm409, %v444, 0.0
      %457 = vadd.xlane.f32.xlu0 %v456
      %v458 = vpop.xlane.xlu0 %457
      %v459 = vsel %vm409, %v445, 0.0
      %460 = vadd.xlane.f32.xlu0 %v459
      %v461 = vpop.xlane.xlu0 %460
      %v462 = vsel %vm409, %v446, 0.0
      %463 = vadd.xlane.f32.xlu0 %v462
      %v464 = vpop.xlane.xlu0 %463
      %v465 = vsel %vm409, %v447, 0.0
      %466 = vadd.xlane.f32.xlu0 %v465
      %v467 = vpop.xlane.xlu0 %466
      %v468 = vsel %vm409, %v448, 0.0
      %469 = vadd.xlane.f32.xlu0 %v468
      %v470 = vpop.xlane.xlu0 %469
      %v471 = vsel %vm409, %v449, 0.0
      %472 = vadd.xlane.f32.xlu0 %v471
      %v473 = vpop.xlane.xlu0 %472
      %v474 = vmul.f32 %v452, 0.03125
      %v475 = vmul.f32 %v455, 0.03125
      %v476 = vmul.f32 %v458, 0.03125
      %v477 = vmul.f32 %v461, 0.03125
      %v478 = vmul.f32 %v464, 0.03125
      %v479 = vmul.f32 %v467, 0.03125
      %v480 = vmul.f32 %v470, 0.03125
      %v481 = vmul.f32 %v473, 0.03125
      %v482 = vmul.f32 %v434, %v434
      %v483 = vmul.f32 %v435, %v435
      %v484 = vmul.f32 %v436, %v436
      %v485 = vmul.f32 %v437, %v437
      %v486 = vmul.f32 %v438, %v438
      %v487 = vmul.f32 %v439, %v439
      %v488 = vmul.f32 %v440, %v440
      %v489 = vmul.f32 %v441, %v441
      %v490 = vsub.f32 %v474, %v482
      %v491 = vsub.f32 %v475, %v483
      %v492 = vsub.f32 %v476, %v484
      %v493 = vsub.f32 %v477, %v485
      %v494 = vsub.f32 %v478, %v486
      %v495 = vsub.f32 %v479, %v487
      %v496 = vsub.f32 %v480, %v488
      %v497 = vsub.f32 %v481, %v489
      %v498 = vmax.f32 %v490, 0.0
      %v499 = vmax.f32 %v491, 0.0
      %v500 = vmax.f32 %v492, 0.0
      %v501 = vmax.f32 %v493, 0.0
      %v502 = vmax.f32 %v494, 0.0
      %v503 = vmax.f32 %v495, 0.0
      %v504 = vmax.f32 %v496, 0.0
      %v505 = vmax.f32 %v497, 0.0
      %v506 = vsub.f32 %v379, %v434
      %v507 = vsub.f32 %v382, %v435
      %v508 = vsub.f32 %v387, %v436
      %v509 = vsub.f32 %v390, %v437
      %v510 = vsub.f32 %v395, %v438
      %v511 = vsub.f32 %v398, %v439
      %v512 = vsub.f32 %v403, %v440
      %v513 = vsub.f32 %v406, %v441
      %v514 = vadd.f32 %v498, 1e-06
      %v515 = vadd.f32 %v499, 1e-06
      %v516 = vadd.f32 %v500, 1e-06
      %v517 = vadd.f32 %v501, 1e-06
      %v518 = vadd.f32 %v502, 1e-06
      %v519 = vadd.f32 %v503, 1e-06
      %v520 = vadd.f32 %v504, 1e-06
      %v521 = vadd.f32 %v505, 1e-06
      %v522 = vrsqrt.pop %v514
      %v523 = vrsqrt.pop %v515
      %v524 = vrsqrt.pop %v516
      %v525 = vrsqrt.pop %v517
      %v526 = vrsqrt.pop %v518
      %v527 = vrsqrt.pop %v519
      %v528 = vrsqrt.pop %v520
      %v529 = vrsqrt.pop %v521
      %v530 = vmul.f32 %v506, %v522
      %v531 = vmul.f32 %v507, %v523
      %v532 = vmul.f32 %v508, %v524
      %v533 = vmul.f32 %v509, %v525
      %v534 = vmul.f32 %v510, %v526
      %v535 = vmul.f32 %v511, %v527
      %v536 = vmul.f32 %v512, %v528
      %v537 = vmul.f32 %v513, %v529
      %v538 = vlaneseq
      %v539 = vshrl.u32 %v538, 7
      %v540 = vsub.s32 1, %v539
      %v541 = vrot.slane %v178, %v540
      %v542 = vmul.f32 %v530, %v541
      %v543 = vmul.f32 %v531, %v541
      %v544 = vmul.f32 %v532, %v541
      %v545 = vmul.f32 %v533, %v541
      %v546 = vmul.f32 %v534, %v541
      %v547 = vmul.f32 %v535, %v541
      %v548 = vmul.f32 %v536, %v541
      %v549 = vmul.f32 %v537, %v541
      %v550 = vlaneseq
      %v551 = vshrl.u32 %v550, 7
      %v552 = vsub.s32 2, %v551
      %v553 = vrot.slane %v178, %v552
      %v554 = vadd.f32 %v542, %v553
      %v555 = vadd.f32 %v543, %v553
      %v556 = vadd.f32 %v544, %v553
      %v557 = vadd.f32 %v545, %v553
      %v558 = vadd.f32 %v546, %v553
      %v559 = vadd.f32 %v547, %v553
      %v560 = vadd.f32 %v548, %v553
      %v561 = vadd.f32 %v549, %v553
      %562 = vst.msk [vmem:[%s175] sm:$0xff] %vm409, %v554
      %563 = vst.msk [vmem:[%s175 + $0x8] sm:$0xff] %vm409, %v555
      %564 = vst.msk [vmem:[%s175 + $0x10] sm:$0xff] %vm409, %v556
      %565 = vst.msk [vmem:[%s175 + $0x18] sm:$0xff] %vm409, %v557
      %566 = vst.msk [vmem:[%s175 + $0x20] sm:$0xff] %vm409, %v558
      %567 = vst.msk [vmem:[%s175 + $0x28] sm:$0xff] %vm409, %v559
      %568 = vst.msk [vmem:[%s175 + $0x30] sm:$0xff] %vm409, %v560
      %569 = vst.msk [vmem:[%s175 + $0x38] sm:$0xff] %vm409, %v561
      %s570 = smul.u32 8, %s14
      %p571 = scmp.lt.s32.totalorder %s570, 15
      %s572 = scalar_select %p571, %s570, 15
      %s573 = smul.addr %s572, 8
      %s574 = scalar_lea.vmem %s3, %s573
      // Predicated region
      $region33: #{tpu_custom_call.1} parent=31 // pred_check
        %p575 = pneg %p100
      $region34: #{tpu_custom_call.1} parent=31 // pred_check_branch
        %577 = sbr.rel (%p575) target = $region36
      $region35: #{tpu_custom_call.1} parent=31 // pred_region
        %s578 = smul.u32 8, %s14
      $region36: #{tpu_custom_call.1} parent=31 // pred_fallthru
        _
    $region32: #{tpu_custom_call.1} parent=5 // pred_fallthru
      _
    %p579 = scmp.le.s32.totalorder 2, %s9
    // Predicated region
    $region37: #{tpu_custom_call.1} parent=5 // pred_check
      %p580 = pneg %p579
    $region38: #{tpu_custom_call.1} parent=5 // pred_check_branch
      %582 = sbr.rel (%p580) target = $region40
    $region39: #{tpu_custom_call.1} parent=5 // pred_region
      %s583 = ssub.s32 %s9, 2
      // Predicated region
      $region41: #{tpu_custom_call.1} parent=39 // pred_check
        %p584 = pneg %p106
      $region42: #{tpu_custom_call.1} parent=39 // pred_check_branch
        %586 = sbr.rel (%p584) target = $region44
      $region43: #{tpu_custom_call.1} parent=39 // pred_region
        %s587 = smul.u32 8, %s15
        %p588 = scmp.lt.s32.totalorder %s587, 15
        %s589 = scalar_select %p588, %s587, 15
        %s590 = smul.addr %s589, 8
        %s591 = scalar_lea.vmem %s3, %s590
      $region44: #{tpu_custom_call.1} parent=39 // pred_fallthru
        _
    $region40: #{tpu_custom_call.1} parent=5 // pred_fallthru
      _
  $region6: #{tpu_custom_call.1} parent=0 // loop_footer
    %s13 = sadd.s32 1, %s9
  $region7: #{tpu_custom_call.1} parent=0 // loop_footer_branch
    %8 = sbr.rel target = $region3
  $region8: #{tpu_custom_call.1} parent=0 // loop_exit
    _

</llo_original>
